<compile_context>
chip_gen: v6e
topology: v6e:2x2x1
jax: 0.10.0
libtpu: 0.0.40
codegen_flags: <defaults>
</compile_context>

<pallas_src>
import functools
import math

import jax
import jax.numpy as jnp
from jax.experimental import pallas as pl
from jax.experimental.pallas import tpu as pltpu

_VMEM_LIMIT = 48 * 1024 * 1024  # safe headroom on v5e/v6e (128 MiB) and v7x (64 MiB)


# ------------------------------ helpers ------------------------------------

def _gelu(x):
    # BERT tanh-approximate GELU.
    # TODO(synk): original pytorch-pretrained-bert uses exact erf GELU; erf has no
    # direct Mosaic lowering, so the tanh approximation is used (tiny numeric drift).
    return 0.5 * x * (1.0 + jnp.tanh(0.7978845608028654 * (x + 0.044715 * x * x * x)))


def _pick_tile(dim, target, align):
    """Largest tile <= target that divides dim and is a multiple of align, else full dim."""
    if dim <= target:
        return dim
    t = (target // align) * align
    while t >= align:
        if dim % t == 0:
            return t
        t -= align
    return dim


def _pick_head_group(nh, dh):
    """Smallest head group giving a lane-dense (>=128-wide) attention block, else all heads."""
    for hg in range(1, nh + 1):
        if nh % hg == 0 and (hg * dh) % 128 == 0:
            return hg
    return nh


# ----------------------- fused matmul + bias (+act) ------------------------

def linear_kernel(x_ref, w_ref, b_ref, o_ref, acc_ref, *, activation):
    @pl.when(pl.program_id(2) == 0)
    def _():
        acc_ref[...] = jnp.zeros_like(acc_ref)

    acc_ref[...] += jnp.dot(x_ref[...].astype(jnp.bfloat16), w_ref[...],
                            preferred_element_type=jnp.float32)

    @pl.when(pl.program_id(2) == pl.num_programs(2) - 1)
    def _():
        y = acc_ref[...] + b_ref[...]
        if activation == "tanh":
            y = jnp.tanh(y)
        elif activation == "gelu":
            y = _gelu(y)
        o_ref[...] = y.astype(o_ref.dtype)


def pallas_linear(x, w, b, activation="none", tm=256, tn=256, tk=512):
    M, K = x.shape
    N = w.shape[1]
    tm = _pick_tile(M, tm, 8)
    tn = _pick_tile(N, tn, 128)
    tk = _pick_tile(K, tk, 128)
    grid = (M // tm, N // tn, K // tk)
    return pl.pallas_call(
        functools.partial(linear_kernel, activation=activation),
        out_shape=jax.ShapeDtypeStruct((M, N), jnp.float32),
        grid=grid,
        in_specs=[pl.BlockSpec((tm, tk), lambda i, j, k: (i, k)),
                  pl.BlockSpec((tk, tn), lambda i, j, k: (k, j)),   # weight reuse over M
                  pl.BlockSpec((1, tn), lambda i, j, k: (0, j))],
        out_specs=pl.BlockSpec((tm, tn), lambda i, j, k: (i, j)),
        scratch_shapes=[pltpu.VMEM((tm, tn), jnp.float32)],
        compiler_params=pltpu.CompilerParams(
            dimension_semantics=("parallel", "parallel", "arbitrary"),
            vmem_limit_bytes=_VMEM_LIMIT),
    )(x, w.astype(jnp.bfloat16), b.reshape(1, N).astype(jnp.float32))


# --------------------- layernorm (optionally + residual) -------------------

def layernorm_kernel(*refs, eps, has_residual):
    if has_residual:
        x_ref, r_ref, g_ref, b_ref, o_ref = refs
        x = x_ref[...] + r_ref[...]
    else:
        x_ref, g_ref, b_ref, o_ref = refs
        x = x_ref[...]
    mean = jnp.mean(x, axis=-1, keepdims=True)
    var = jnp.mean((x - mean) ** 2, axis=-1, keepdims=True)
    o_ref[...] = (x - mean) * jax.lax.rsqrt(var + eps) * g_ref[...] + b_ref[...]


def pallas_layernorm(x, g, b, residual=None, eps=1e-12, block_rows=512):
    M, H = x.shape
    tm = _pick_tile(M, block_rows, 8)
    has_res = residual is not None
    in_specs = [pl.BlockSpec((tm, H), lambda i: (i, 0))]
    args = [x]
    if has_res:
        in_specs.append(pl.BlockSpec((tm, H), lambda i: (i, 0)))
        args.append(residual)
    in_specs += [pl.BlockSpec((1, H), lambda i: (0, 0)),
                 pl.BlockSpec((1, H), lambda i: (0, 0))]
    args += [g.reshape(1, H), b.reshape(1, H)]
    return pl.pallas_call(
        functools.partial(layernorm_kernel, eps=eps, has_residual=has_res),
        out_shape=jax.ShapeDtypeStruct((M, H), jnp.float32),
        grid=(M // tm,),
        in_specs=in_specs,
        out_specs=pl.BlockSpec((tm, H), lambda i: (i, 0)),
        compiler_params=pltpu.CompilerParams(
            dimension_semantics=("parallel",)),
    )(*args)


# ------------------ scaled-dot-product attention + softmax -----------------

def attention_kernel(q_ref, k_ref, v_ref, m_ref, o_ref, *, scale, hg, dh):
    qb = q_ref[0] * scale                    # fold 1/sqrt(Dh) into q (S x hg*Dh work)
    kb = k_ref[0]
    vb = v_ref[0]
    mask = m_ref[0]                          # (1, S) additive mask over key axis
    outs = []
    # TODO(synk): for very long sequences (S >= ~1024) tile the key axis with an
    # online-softmax (flash) accumulator instead of materializing (S, S) scores.
    for hd in range(hg):
        lo = hd * dh
        q = qb[:, lo:lo + dh].astype(jnp.bfloat16)           # (S, Dh)
        k = kb[:, lo:lo + dh].astype(jnp.bfloat16)
        v = vb[:, lo:lo + dh].astype(jnp.bfloat16)
        s = jax.lax.dot_general(q, k, (((1,), (1,)), ((), ())),
                                preferred_element_type=jnp.float32) + mask
        s = s - jnp.max(s, axis=-1, keepdims=True)
        p = jnp.exp(s)
        p = p * pl.reciprocal(jnp.sum(p, axis=-1, keepdims=True), approx=True)
        # TODO(synk): attention-probs dropout omitted (eval mode -> identity).
        outs.append(jnp.dot(p.astype(jnp.bfloat16), v,
                            preferred_element_type=jnp.float32))
    ctx = jnp.concatenate(outs, axis=-1) if hg > 1 else outs[0]
    o_ref[0] = ctx                            # single lane-dense (S, hg*Dh) store


def pallas_attention(q, k, v, mask_add, nh):
    B, S, H = q.shape
    dh = H // nh
    hg = _pick_head_group(nh, dh)
    ng = nh // hg
    blk = hg * dh
    scale = 1.0 / math.sqrt(dh)
    qkv_spec = pl.BlockSpec((1, S, blk), lambda b, g: (b, 0, g))
    return pl.pallas_call(
        functools.partial(attention_kernel, scale=scale, hg=hg, dh=dh),
        out_shape=jax.ShapeDtypeStruct((B, S, H), jnp.float32),
        grid=(B, ng),
        in_specs=[qkv_spec, qkv_spec, qkv_spec,
                  pl.BlockSpec((1, 1, S), lambda b, g: (b, 0, 0))],
        out_specs=pl.BlockSpec((1, S, blk), lambda b, g: (b, 0, g)),
        compiler_params=pltpu.CompilerParams(
            dimension_semantics=("parallel", "parallel"),
            vmem_limit_bytes=_VMEM_LIMIT),
    )(q, k, v, mask_add)


# ------------------------------ Model wiring -------------------------------

def init_params(key, cfg):
    H, I = cfg["hidden"], cfg["intermediate"]

    def init(k, shape, dtype=jnp.bfloat16):
        return (0.02 * jax.random.normal(k, shape, jnp.float32)).astype(dtype)

    keys = jax.random.split(key, 8 + cfg["layers"])
    params = {
        "word_emb": init(keys[0], (cfg["vocab"], H), jnp.float32),
        "pos_emb":  init(keys[1], (cfg["max_pos"], H), jnp.float32),
        "type_emb": init(keys[2], (cfg["type_vocab"], H), jnp.float32),
        "emb_ln_g": jnp.ones((H,), jnp.float32),
        "emb_ln_b": jnp.zeros((H,), jnp.float32),
        "pool_w": init(keys[3], (H, H)),
        "pool_b": jnp.zeros((H,), jnp.float32),
        "cls_w": init(keys[4], (H, cfg["num_labels"])),
        "cls_b": jnp.zeros((cfg["num_labels"],), jnp.float32),
        "layers": [],
    }
    for li in range(cfg["layers"]):
        lk = jax.random.split(keys[8 + li], 6)
        wq = init(lk[0], (H, H))
        wk = init(lk[1], (H, H))
        wv = init(lk[2], (H, H))
        params["layers"].append({
            # QKV fused at weight-load time: one (H, 3H) matmul per layer.
            "wqkv": jnp.concatenate([wq, wk, wv], axis=1),
            "bqkv": jnp.zeros((3 * H,), jnp.float32),
            "wo": init(lk[3], (H, H)), "bo": jnp.zeros((H,), jnp.float32),
            "ln1_g": jnp.ones((H,), jnp.float32), "ln1_b": jnp.zeros((H,), jnp.float32),
            "w1": init(lk[4], (H, I)), "b1": jnp.zeros((I,), jnp.float32),
            "w2": init(lk[5], (I, H)), "b2": jnp.zeros((H,), jnp.float32),
            "ln2_g": jnp.ones((H,), jnp.float32), "ln2_b": jnp.zeros((H,), jnp.float32),
        })
    return params


def bert_classifier_forward(params, input_ids, segment_ids, attention_mask, cfg):
    B, S = input_ids.shape
    H, nh = cfg["hidden"], cfg["heads"]

    # --- Embeddings (gathers are glue; layernorm is a Pallas kernel) ---
    pos = jnp.arange(S)
    emb = (params["word_emb"][input_ids]
           + params["pos_emb"][pos][None, :, :]
           + params["type_emb"][segment_ids])
    h = pallas_layernorm(emb.reshape(B * S, H),
                         params["emb_ln_g"], params["emb_ln_b"])
    # (embedding dropout is identity in eval mode)

    # BERT-style additive attention mask: (1 - mask) * -10000
    mask_add = ((1.0 - attention_mask.astype(jnp.float32)) * -10000.0).reshape(B, 1, S)

    # --- Encoder layers ---
    for layer in params["layers"]:
        qkv = pallas_linear(h, layer["wqkv"], layer["bqkv"])            # (B*S, 3H)
        # contiguous column slices; heads stay merged so no transposes are needed
        q = qkv[:, :H].reshape(B, S, H)
        k = qkv[:, H:2 * H].reshape(B, S, H)
        v = qkv[:, 2 * H:].reshape(B, S, H)
        ctx = pallas_attention(q, k, v, mask_add, nh).reshape(B * S, H)
        attn_out = pallas_linear(ctx, layer["wo"], layer["bo"])
        h = pallas_layernorm(attn_out, layer["ln1_g"], layer["ln1_b"], residual=h)
        inter = pallas_linear(h, layer["w1"], layer["b1"], activation="gelu")
        ffn_out = pallas_linear(inter, layer["w2"], layer["b2"])
        h = pallas_layernorm(ffn_out, layer["ln2_g"], layer["ln2_b"], residual=h)

    # --- Pooler: tanh(Linear(first-token hidden)) ---
    first_tok = h.reshape(B, S, H)[:, 0, :]
    pooled = pallas_linear(first_tok, params["pool_w"], params["pool_b"],
                           activation="tanh")

    # --- Classifier head (dropout is identity in eval mode) ---
    logits = pallas_linear(pooled, params["cls_w"], params["cls_b"])
    return logits


# --------------------------------- Driver ----------------------------------

if __name__ == "__main__":
    cfg = dict(vocab=50, hidden=32, heads=4, layers=2, intermediate=64,
               max_pos=16, type_vocab=2, num_labels=3)

    key = jax.random.PRNGKey(0)
    kp, kid = jax.random.split(key, 2)
    params = init_params(kp, cfg)

    B, S = 2, 8
    input_ids = jax.random.randint(kid, (B, S), 0, cfg["vocab"], dtype=jnp.int32)
    segment_ids = jnp.concatenate(
        [jnp.zeros((B, S // 2), jnp.int32), jnp.ones((B, S // 2), jnp.int32)], axis=1)
    attention_mask = jnp.ones((B, S), jnp.int32).at[1, 6:].set(0)  # pad last 2 tokens of row 1

    logits = bert_classifier_forward(params, input_ids, segment_ids, attention_mask, cfg)
    jax.block_until_ready(logits)
    assert logits.shape == (B, cfg["num_labels"])
    print("KERNEL_OK")
</pallas_src>

<mosaic_0001>
module attributes {stable_mosaic.version = 11 : i64} {
  func.func @layernorm_kernel(%arg0: i32, %arg1: memref<16x32xf32, #tpu.memory_space<vmem>>, %arg2: memref<1x32xf32, #tpu.memory_space<vmem>>, %arg3: memref<1x32xf32, #tpu.memory_space<vmem>>, %arg4: memref<16x32xf32, #tpu.memory_space<vmem>>) attributes {dimension_semantics = [#tpu.dimension_semantics<parallel>], iteration_bounds = array<i64: 1>, scalar_prefetch = 0 : i64, scratch_operands = 0 : i64, tpu.core_type = #tpu.core_type<tc>, window_params = [{transform_indices = @transform_0, window_bounds = array<i64: 16, 32>}, {pipeline_mode = #tpu.pipeline_mode<synchronous>, transform_indices = @transform_1, window_bounds = array<i64: 1, 32>}, {pipeline_mode = #tpu.pipeline_mode<synchronous>, transform_indices = @transform_2, window_bounds = array<i64: 1, 32>}, {transform_indices = @transform_3, window_bounds = array<i64: 16, 32>}]} {
    %c0 = arith.constant 0 : index
    %c0_0 = arith.constant 0 : index
    %0 = vector.load %arg1[%c0, %c0_0] : memref<16x32xf32, #tpu.memory_space<vmem>>, vector<16x32xf32>
    %cst = arith.constant dense<0.000000e+00> : vector<16xf32>
    %1 = vector.multi_reduction <add>, %0, %cst [1] : vector<16x32xf32> to vector<16xf32>
    %2 = vector.shape_cast %1 : vector<16xf32> to vector<16x1xf32>
    %cst_1 = arith.constant 3.200000e+01 : f32
    %3 = vector.broadcast %cst_1 : f32 to vector<16x1xf32>
    %4 = arith.divf %2, %3 : vector<16x1xf32>
    %5 = vector.broadcast %4 : vector<16x1xf32> to vector<16x32xf32>
    %6 = arith.subf %0, %5 : vector<16x32xf32>
    %7 = arith.mulf %6, %6 : vector<16x32xf32>
    %cst_2 = arith.constant dense<0.000000e+00> : vector<16xf32>
    %8 = vector.multi_reduction <add>, %7, %cst_2 [1] : vector<16x32xf32> to vector<16xf32>
    %9 = vector.shape_cast %8 : vector<16xf32> to vector<16x1xf32>
    %cst_3 = arith.constant 3.200000e+01 : f32
    %10 = vector.broadcast %cst_3 : f32 to vector<16x1xf32>
    %11 = arith.divf %9, %10 : vector<16x1xf32>
    %12 = vector.broadcast %4 : vector<16x1xf32> to vector<16x32xf32>
    %13 = arith.subf %0, %12 : vector<16x32xf32>
    %cst_4 = arith.constant 9.99999996E-13 : f32
    %14 = vector.broadcast %cst_4 : f32 to vector<16x1xf32>
    %15 = arith.addf %11, %14 : vector<16x1xf32>
    %16 = math.rsqrt %15 : vector<16x1xf32>
    %17 = vector.broadcast %16 : vector<16x1xf32> to vector<16x32xf32>
    %18 = arith.mulf %13, %17 : vector<16x32xf32>
    %c0_5 = arith.constant 0 : index
    %c0_6 = arith.constant 0 : index
    %19 = vector.load %arg2[%c0_5, %c0_6] : memref<1x32xf32, #tpu.memory_space<vmem>>, vector<1x32xf32>
    %20 = vector.broadcast %19 : vector<1x32xf32> to vector<16x32xf32>
    %21 = arith.mulf %18, %20 : vector<16x32xf32>
    %c0_7 = arith.constant 0 : index
    %c0_8 = arith.constant 0 : index
    %22 = vector.load %arg3[%c0_7, %c0_8] : memref<1x32xf32, #tpu.memory_space<vmem>>, vector<1x32xf32>
    %23 = vector.broadcast %22 : vector<1x32xf32> to vector<16x32xf32>
    %24 = arith.addf %21, %23 : vector<16x32xf32>
    %c0_9 = arith.constant 0 : index
    %c0_10 = arith.constant 0 : index
    %25 = vector.load %arg4[%c0_9, %c0_10] : memref<16x32xf32, #tpu.memory_space<vmem>>, vector<16x32xf32>
    tpu.vector_store %arg4[%c0_9, %c0_10], %24 {strides = array<i32>} : memref<16x32xf32, #tpu.memory_space<vmem>>, vector<16x32xf32>,
    return
  }
  func.func @transform_0(%arg0: i32) -> (i32, i32) {
    %c0_i32 = arith.constant 0 : i32
    %c0_i32_0 = arith.constant 0 : i32
    return %arg0, %c0_i32 : i32, i32
  }
  func.func @transform_1(%arg0: i32) -> (i32, i32) {
    %c0_i32 = arith.constant 0 : i32
    %c0_i32_0 = arith.constant 0 : i32
    %c0_i32_1 = arith.constant 0 : i32
    return %c0_i32, %c0_i32_0 : i32, i32
  }
  func.func @transform_2(%arg0: i32) -> (i32, i32) {
    %c0_i32 = arith.constant 0 : i32
    %c0_i32_0 = arith.constant 0 : i32
    %c0_i32_1 = arith.constant 0 : i32
    return %c0_i32, %c0_i32_0 : i32, i32
  }
  func.func @transform_3(%arg0: i32) -> (i32, i32) {
    %c0_i32 = arith.constant 0 : i32
    %c0_i32_0 = arith.constant 0 : i32
    return %arg0, %c0_i32 : i32, i32
  }
}

</mosaic_0001>

<llo_original>
// kernel: tpu_custom_call.1
$region0: #{tpu_custom_call.1}
  #allocation0 [shape = 'u32[]', space=smem, size = 0x4, offset = 0x4, fixed_abs, tag = 'smem constant byte address 0x4 - core index']
  #allocation1 [shape = 'u32[144,128]{1,0:T(1,128)}', space=vmem, size = 0x12000, scoped, tag = 'internal scratch']
  %s0 = inlined_call_operand.hbm [shape: f32[16,32], index: 0, kind: input, shape index: {}]
  %s1 = inlined_call_operand.vmem [shape: f32[1,32], index: 1, kind: input, shape index: {}]
  %s2 = inlined_call_operand.vmem [shape: f32[1,32], index: 2, kind: input, shape index: {}]
  %s3 = inlined_call_operand.hbm [shape: f32[16,32], index: 3, kind: output, shape index: {}]
  %s4 = sld [smem:[#allocation0]]
  $region26: #{tpu_custom_call.1} parent=0
    _
  %s6 = ssub.s32 1, %s4
  %s7 = scalar_select 0, %s6, %s4
  $region1: #{tpu_custom_call.1} parent=0
    #allocation2 [shape = 'u8[8192]{0}', space=vmem, size = 0x2000, scoped, tag = 'input window, operand 0, single buffered']
    #allocation3 [shape = 's32[1]{0}', space=sflag, size = 0x4, scoped, tag = 'scoped memory for tpu_custom_call.1']
    #allocation4 [shape = 's32[1]{0}', space=sflag, size = 0x4, scoped, tag = 'scoped memory for tpu_custom_call.1']
    #allocation5 [shape = 'u8[8192]{0}', space=vmem, size = 0x2000, scoped, tag = 'output window, operand 0, single buffered']
    %8 = vsyncpa [#allocation3], 0
    %9 = vsyncpa [#allocation4], 0
    // Predicated region
    $region2: #{tpu_custom_call.1} parent=1 // pred_check
      _
    $region3: #{tpu_custom_call.1} parent=1 // pred_check_branch
      %11 = sbr.rel (0) target = $region5
    $region4: #{tpu_custom_call.1} parent=1 // pred_region
      %s13 = ssub.s32 256, 256
      %14 = vsyncadd [#allocation3], %s13
      %s15 = sshll.u32 [#allocation2], 4
      %s16 = int_to_ptr.vmem [resolvable:$true] %s15
      %21 = dma.hbm_to_vmem [thread:$0]  %s0, 256, %s16, [#allocation3], 128, 128, 8
    $region5: #{tpu_custom_call.1} parent=1 // pred_fallthru
      _
    // Predicated region
    $region6: #{tpu_custom_call.1} parent=1 // pred_check
      _
    $region7: #{tpu_custom_call.1} parent=1 // pred_check_branch
      %23 = sbr.rel (0) target = $region9
    $region8: #{tpu_custom_call.1} parent=1 // pred_region
      _
    $region9: #{tpu_custom_call.1} parent=1 // pred_fallthru
      _
    // Predicated region
    $region10: #{tpu_custom_call.1} parent=1 // pred_check
      _
    $region11: #{tpu_custom_call.1} parent=1 // pred_check_branch
      %25 = sbr.rel (0) target = $region13
    $region12: #{tpu_custom_call.1} parent=1 // pred_region
      _
    $region13: #{tpu_custom_call.1} parent=1 // pred_fallthru
      _
    // Predicated region
    $region14: #{tpu_custom_call.1} parent=1 // pred_check
      _
    $region15: #{tpu_custom_call.1} parent=1 // pred_check_branch
      %27 = sbr.rel (0) target = $region17
    $region16: #{tpu_custom_call.1} parent=1 // pred_region
      %28 = dma.done [#allocation3], 256
    $region17: #{tpu_custom_call.1} parent=1 // pred_fallthru
      _
    %v29 = vld [vmem:[#allocation2] sm:$0xff]
    %v30 = vld [vmem:[#allocation2 + $0x8] sm:$0xff]
    %vm31 = vcmask 261120
    %v32 = vsel %vm31, %v29, 0.0
    %33 = vadd.xlane.f32.xlu0 %v32
    %v34 = vpop.xlane.xlu0 %33
    %v35 = vsel %vm31, %v30, 0.0
    %36 = vadd.xlane.f32.xlu0 %v35
    %v37 = vpop.xlane.xlu0 %36
    %v38 = vrcp.pop 32.0
    %v39 = vmul.f32 %v34, %v38
    %v40 = vmul.f32 %v37, %v38
    %v41 = vsub.f32 %v29, %v39
    %v42 = vsub.f32 %v30, %v40
    %v43 = vmul.f32 %v41, %v41
    %v44 = vmul.f32 %v42, %v42
    %v45 = vsel %vm31, %v43, 0.0
    %46 = vadd.xlane.f32.xlu0 %v45
    %v47 = vpop.xlane.xlu0 %46
    %v48 = vsel %vm31, %v44, 0.0
    %49 = vadd.xlane.f32.xlu0 %v48
    %v50 = vpop.xlane.xlu0 %49
    %v51 = vmul.f32 %v47, %v38
    %v52 = vmul.f32 %v50, %v38
    %v53 = vadd.f32 %v51, 1e-12
    %v54 = vadd.f32 %v52, 1e-12
    %v55 = vrsqrt.pop %v53
    %v56 = vrsqrt.pop %v54
    %v57 = vmul.f32 %v41, %v55
    %v58 = vmul.f32 %v42, %v56
    %v59 = vld [vmem:[%s1] sm:$0x1]
    %v61 = vlaneseq
    %v62 = vshrl.u32 %v61, 7
    %v63 = vsub.s32 0, %v62
    %v64 = vrot.slane %v59, %v63
    %v66 = vmul.f32 %v57, %v64
    %v67 = vmul.f32 %v58, %v64
    %v68 = vld [vmem:[%s2] sm:$0x1]
    %v70 = vlaneseq
    %v71 = vshrl.u32 %v70, 7
    %v72 = vsub.s32 0, %v71
    %v73 = vrot.slane %v68, %v72
    %v75 = vadd.f32 %v66, %v73
    %v76 = vadd.f32 %v67, %v73
    %77 = vst.msk [vmem:[#allocation5] sm:$0xff] %vm31, %v75
    %78 = vst.msk [vmem:[#allocation5 + $0x8] sm:$0xff] %vm31, %v76
    // Predicated region
    $region18: #{tpu_custom_call.1} parent=1 // pred_check
      _
    $region19: #{tpu_custom_call.1} parent=1 // pred_check_branch
      %80 = sbr.rel (0) target = $region21
    $region20: #{tpu_custom_call.1} parent=1 // pred_region
      %s82 = ssub.s32 256, 256
      %83 = vsyncadd [#allocation4], %s82
      %s84 = sshll.u32 [#allocation5], 4
      %s85 = int_to_ptr.vmem [resolvable:$true] %s84
      %90 = dma.vmem_to_hbm [thread:$0]  %s85, 256, %s3, [#allocation4], 128, 128, 8
    $region21: #{tpu_custom_call.1} parent=1 // pred_fallthru
      _
    // Predicated region
    $region22: #{tpu_custom_call.1} parent=1 // pred_check
      _
    $region23: #{tpu_custom_call.1} parent=1 // pred_check_branch
      %92 = sbr.rel (0) target = $region25
    $region24: #{tpu_custom_call.1} parent=1 // pred_region
      %93 = dma.done [#allocation4], 256
    $region25: #{tpu_custom_call.1} parent=1 // pred_fallthru
      _
    %94 = vsyncpa [#allocation3], 1
    %95 = vsyncpa [#allocation4], 1

</llo_original>
